<compile_context>
chip_gen: v6e
topology: v6e:2x2x1
jax: 0.10.0
libtpu: 0.0.40
codegen_flags: <defaults>
</compile_context>

<pallas_src>
import functools

import jax
import jax.numpy as jnp
from jax.experimental import pallas as pl
from jax.experimental.pallas import tpu as pltpu


# ---------------------------------------------------------------------------
# 1) Prefix MLP:  tanh(prefix_table @ W1 + b1) @ W2 + b2   — executed ONCE.
#    Two K-tiled (x @ W + b) kernels with an f32 accumulator; weight blocks
#    stream through VMEM instead of requiring whole H x H residency.
# ---------------------------------------------------------------------------
def _linear_kernel(x_ref, w_ref, b_ref, o_ref, acc_ref, *, activation):
    k = pl.program_id(0)

    @pl.when(k == 0)
    def _():
        acc_ref[...] = jnp.zeros_like(acc_ref)

    acc_ref[...] += jnp.dot(
        x_ref[...], w_ref[...], preferred_element_type=jnp.float32
    )

    @pl.when(k == pl.num_programs(0) - 1)
    def _():
        r = acc_ref[...] + b_ref[...].astype(jnp.float32)
        if activation == "tanh":
            r = jnp.tanh(r)
        o_ref[...] = r.astype(o_ref.dtype)


def _pick_k_tile(K, N, w_itemsize):
    """Largest K-tile (multiple of 128 that divides K) whose (tk, N) weight
    block stays <= ~4 MiB; fall back to the full K when K cannot be tiled."""
    if K % 128 != 0:
        return K
    budget = 4 << 20
    for cand in (1024, 512, 256, 128):
        if K % cand == 0 and cand * N * w_itemsize <= budget:
            return min(K, cand)
    return 128


def _linear(x, w, b, *, activation=None, out_dtype=None):
    M, K = x.shape
    K2, N = w.shape
    assert K == K2
    out_dtype = out_dtype or x.dtype

    tk = _pick_k_tile(K, N, jnp.dtype(w.dtype).itemsize)
    grid = (K // tk,)

    xi = jnp.dtype(x.dtype).itemsize
    wi = jnp.dtype(w.dtype).itemsize
    oi = jnp.dtype(out_dtype).itemsize
    # Double-buffered input/output blocks + f32 accumulator scratch.
    need = (2 * M * tk * xi + 2 * tk * N * wi + 2 * N * 4
            + 2 * M * N * oi + M * N * 4)
    vmem_limit = int(max(4 << 20, min(128 << 20, 2 * need)))

    return pl.pallas_call(
        functools.partial(_linear_kernel, activation=activation),
        out_shape=jax.ShapeDtypeStruct((M, N), out_dtype),
        grid_spec=pltpu.PrefetchScalarGridSpec(
            num_scalar_prefetch=0,
            grid=grid,
            in_specs=[
                pl.BlockSpec((M, tk), lambda k: (0, k)),
                pl.BlockSpec((tk, N), lambda k: (k, 0)),
                pl.BlockSpec((1, N), lambda k: (0, 0)),
            ],
            out_specs=pl.BlockSpec((M, N), lambda k: (0, 0)),
            scratch_shapes=[pltpu.VMEM((M, N), jnp.float32)],
        ),
        compiler_params=pltpu.CompilerParams(
            dimension_semantics=("arbitrary",),
            vmem_limit_bytes=vmem_limit,
        ),
    )(x, w, b)


def _prefix_mlp(ptab, w1, b1, w2, b2, *, out_dtype):
    # Batch-invariant: runs exactly once.  Compute dtype follows the weight
    # dtype (pass bf16 params for MXU-native matmuls); accumulation is f32.
    h = _linear(ptab.astype(w1.dtype), w1, b1, activation="tanh",
                out_dtype=w1.dtype)
    return _linear(h.astype(w2.dtype), w2, b2, activation=None,
                   out_dtype=out_dtype)


# ---------------------------------------------------------------------------
# 2) Fused embedding gather + [prefix ; emb] concat.
#    Per-batch grid; ids scalar-prefetched to SMEM; the vocab table stays in
#    HBM and needed rows are DMA'd straight into the combined output block.
# ---------------------------------------------------------------------------
def _fused_embed_kernel(ids_ref, prefix_ref, etab_hbm, out_ref, sem,
                        *, P, S, unroll):
    b = pl.program_id(0)

    # Prefix rows are identical for every batch entry: plain VMEM store.
    out_ref[0:P, :] = prefix_ref[...]

    # One row DMA per token, all charged to a single scalar DMA semaphore.
    def _copy(s):
        row = ids_ref[b, s]
        return pltpu.make_async_copy(
            etab_hbm.at[pl.ds(row, 1), :],
            out_ref.at[pl.ds(P + s, 1), :],
            sem,
        )

    def _issue(s, carry):
        _copy(s).start()
        return carry

    jax.lax.fori_loop(0, S, _issue, 0, unroll=unroll)

    # All copies are identically sized, so draining with the same re-built
    # descriptors is exact regardless of completion order.
    def _drain(s, carry):
        _copy(s).wait()
        return carry

    jax.lax.fori_loop(0, S, _drain, 0, unroll=unroll)


def _fused_embed(ids, prefix, etab):
    """Returns the combined embedding (B, P+S, H) = [prefix ; embed_table[ids]]."""
    B, S = ids.shape
    P, H = prefix.shape
    T = P + S
    out_dtype = etab.dtype
    it = jnp.dtype(out_dtype).itemsize

    # Live VMEM: double-buffered (T, H) output block + small (P, H) prefix block.
    # TODO(synk): tile the sequence axis too when T * H * itemsize approaches
    # the VMEM budget (very long sequences); also bitcast bf16/int8 tables to a
    # u32 view so each row DMA stays sublane-dense.
    need = 2 * T * H * it + 2 * P * H * it + (1 << 20)
    vmem_limit = int(max(4 << 20, min(128 << 20, 2 * need)))
    unroll = int(S) if S <= 32 else 8

    return pl.pallas_call(
        functools.partial(_fused_embed_kernel, P=P, S=S, unroll=unroll),
        out_shape=jax.ShapeDtypeStruct((B, T, H), out_dtype),
        grid_spec=pltpu.PrefetchScalarGridSpec(
            num_scalar_prefetch=1,
            grid=(B,),
            in_specs=[
                pl.BlockSpec((P, H), lambda b, ids_s: (0, 0)),  # prefix (VMEM)
                pl.BlockSpec(memory_space=pl.ANY),              # table stays in HBM
            ],
            out_specs=pl.BlockSpec((None, T, H), lambda b, ids_s: (b, 0, 0)),
            scratch_shapes=[pltpu.SemaphoreType.DMA],
        ),
        compiler_params=pltpu.CompilerParams(
            dimension_semantics=("parallel",),   # batch shards across TCs on v7x
            vmem_limit_bytes=vmem_limit,
        ),
    )(ids, prefix.astype(out_dtype), etab)


# ---------------------------------------------------------------------------
# Forward wrapper.
# ---------------------------------------------------------------------------
def prefix_tuning_forward(input_ids, attention_mask, params):
    """Returns (combined_embedding (B, P+S, H), combined_attention_mask (B, P+S))."""
    B, S = input_ids.shape
    ptab = params["prefix_table"]          # (P, H)
    w1, b1 = params["w1"], params["b1"]    # (H, H), (1, H)  (stored as x @ W)
    w2, b2 = params["w2"], params["b2"]    # (H, H), (1, H)
    etab = params["embed_table"]           # (V, H)
    P, H = ptab.shape

    # Batch-invariant prefix MLP, computed once; emitted in the table dtype so
    # the combined embedding keeps the table's dtype (no silent f32 promotion).
    prefix = _prefix_mlp(ptab, w1, b1, w2, b2, out_dtype=etab.dtype)     # (P, H)

    # Fused gather + concat: writes [prefix ; embed(ids)] directly.
    comb_emb = _fused_embed(input_ids.astype(jnp.int32), prefix, etab)   # (B, P+S, H)

    if attention_mask is None:
        comb_mask = None
    else:
        comb_mask = jnp.concatenate(
            [jnp.ones((B, P), jnp.float32), attention_mask.astype(jnp.float32)],
            axis=1)
    return comb_emb, comb_mask


def _reference(input_ids, attention_mask, params):
    """Pure-JAX reference of the same forward (for sanity check)."""
    B = input_ids.shape[0]
    pe = params["prefix_table"]
    h = jnp.tanh(pe @ params["w1"] + params["b1"])
    prefix = h @ params["w2"] + params["b2"]                      # (P, H)
    prefix = jnp.broadcast_to(prefix[None], (B,) + prefix.shape)  # (B, P, H)
    inp_emb = params["embed_table"][input_ids]                    # (B, S, H)
    comb_emb = jnp.concatenate([prefix, inp_emb], axis=1)
    comb_mask = jnp.concatenate(
        [jnp.ones((B, prefix.shape[1]), jnp.float32),
         attention_mask.astype(jnp.float32)], axis=1)
    return comb_emb, comb_mask


if __name__ == "__main__":
    # Small shapes consistent with the module.
    batch = 2
    num_virtual_tokens = 8
    seq_len = 8
    hidden_size = 32
    vocab_size = 16

    key = jax.random.PRNGKey(0)
    k_pe, k_w1, k_b1, k_w2, k_b2, k_et, k_ids = jax.random.split(key, 7)

    bound = 1.0 / jnp.sqrt(hidden_size)
    params = {
        # nn.Embedding(num_virtual_tokens, hidden_size): N(0, 1)
        "prefix_table": jax.random.normal(
            k_pe, (num_virtual_tokens, hidden_size), jnp.float32),
        # nn.Linear(hidden, hidden) x2: U(-1/sqrt(fan_in), 1/sqrt(fan_in));
        # stored pre-transposed (x @ W).
        "w1": jax.random.uniform(k_w1, (hidden_size, hidden_size), jnp.float32,
                                 -bound, bound),
        "b1": jax.random.uniform(k_b1, (1, hidden_size), jnp.float32, -bound, bound),
        "w2": jax.random.uniform(k_w2, (hidden_size, hidden_size), jnp.float32,
                                 -bound, bound),
        "b2": jax.random.uniform(k_b2, (1, hidden_size), jnp.float32, -bound, bound),
        # stand-in for model.embeddings
        "embed_table": jax.random.normal(k_et, (vocab_size, hidden_size), jnp.float32),
    }

    input_ids = jax.random.randint(k_ids, (batch, seq_len), 0, vocab_size, jnp.int32)
    attention_mask = jnp.ones((batch, seq_len), jnp.float32)

    comb_emb, comb_mask = prefix_tuning_forward(input_ids, attention_mask, params)
    jax.block_until_ready((comb_emb, comb_mask))

    ref_emb, ref_mask = _reference(input_ids, attention_mask, params)
    assert comb_emb.shape == ref_emb.shape
    assert jnp.allclose(comb_emb, ref_emb, atol=1e-5, rtol=1e-5)
    assert jnp.allclose(comb_mask, ref_mask)

    print("KERNEL_OK")
</pallas_src>

<mosaic_0001>
module attributes {stable_mosaic.version = 11 : i64} {
  func.func @_linear_kernel(%arg0: i32, %arg1: memref<8x32xf32, #tpu.memory_space<vmem>>, %arg2: memref<32x32xf32, #tpu.memory_space<vmem>>, %arg3: memref<1x32xf32, #tpu.memory_space<vmem>>, %arg4: memref<8x32xf32, #tpu.memory_space<vmem>>, %arg5: memref<8x32xf32, #tpu.memory_space<vmem>>) attributes {dimension_semantics = [#tpu.dimension_semantics<arbitrary>], iteration_bounds = array<i64: 1>, scalar_prefetch = 0 : i64, scratch_operands = 1 : i64, tpu.core_type = #tpu.core_type<tc>, window_params = [{transform_indices = @transform_0, window_bounds = array<i64: 8, 32>}, {transform_indices = @transform_1, window_bounds = array<i64: 32, 32>}, {pipeline_mode = #tpu.pipeline_mode<synchronous>, transform_indices = @transform_2, window_bounds = array<i64: 1, 32>}, {pipeline_mode = #tpu.pipeline_mode<synchronous>, transform_indices = @transform_3, window_bounds = array<i64: 8, 32>}]} {
    %c0_i32 = arith.constant 0 : i32
    %0 = arith.cmpi eq, %arg0, %c0_i32 : i32
    %1 = arith.extui %0 : i1 to i32
    %c0_i32_0 = arith.constant 0 : i32
    %2 = arith.cmpi ne, %1, %c0_i32_0 : i32
    scf.if %2 {
      %cst_10 = arith.constant 0.000000e+00 : f32
      %12 = vector.broadcast %cst_10 : f32 to vector<8x32xf32>
      %c0_11 = arith.constant 0 : index
      %c0_12 = arith.constant 0 : index
      %13 = vector.load %arg5[%c0_11, %c0_12] : memref<8x32xf32, #tpu.memory_space<vmem>>, vector<8x32xf32>
      tpu.vector_store %arg5[%c0_11, %c0_12], %12 {strides = array<i32>} : memref<8x32xf32, #tpu.memory_space<vmem>>, vector<8x32xf32>,
    } else {
    }
    %c0 = arith.constant 0 : index
    %c0_1 = arith.constant 0 : index
    %3 = vector.load %arg5[%c0, %c0_1] : memref<8x32xf32, #tpu.memory_space<vmem>>, vector<8x32xf32>
    %c0_2 = arith.constant 0 : index
    %c0_3 = arith.constant 0 : index
    %4 = vector.load %arg1[%c0_2, %c0_3] : memref<8x32xf32, #tpu.memory_space<vmem>>, vector<8x32xf32>
    %c0_4 = arith.constant 0 : index
    %c0_5 = arith.constant 0 : index
    %5 = vector.load %arg2[%c0_4, %c0_5] : memref<32x32xf32, #tpu.memory_space<vmem>>, vector<32x32xf32>
    %cst = arith.constant dense<0.000000e+00> : vector<8x32xf32>
    %6 = tpu.matmul %4, %5, %cst {dimension_numbers = #tpu.dot_dimension_numbers<[1], [0], [0], [1], [0, 0, 1, 1], [], []>} : vector<8x32xf32>, vector<32x32xf32>, vector<8x32xf32> -> vector<8x32xf32>
    %7 = arith.addf %3, %6 : vector<8x32xf32>
    %c0_6 = arith.constant 0 : index
    %c0_7 = arith.constant 0 : index
    %8 = vector.load %arg5[%c0_6, %c0_7] : memref<8x32xf32, #tpu.memory_space<vmem>>, vector<8x32xf32>
    tpu.vector_store %arg5[%c0_6, %c0_7], %7 {strides = array<i32>} : memref<8x32xf32, #tpu.memory_space<vmem>>, vector<8x32xf32>,
    %c0_i32_8 = arith.constant 0 : i32
    %9 = arith.cmpi eq, %arg0, %c0_i32_8 : i32
    %10 = arith.extui %9 : i1 to i32
    %c0_i32_9 = arith.constant 0 : i32
    %11 = arith.cmpi ne, %10, %c0_i32_9 : i32
    scf.if %11 {
      %c0_10 = arith.constant 0 : index
      %c0_11 = arith.constant 0 : index
      %12 = vector.load %arg5[%c0_10, %c0_11] : memref<8x32xf32, #tpu.memory_space<vmem>>, vector<8x32xf32>
      %c0_12 = arith.constant 0 : index
      %c0_13 = arith.constant 0 : index
      %13 = vector.load %arg3[%c0_12, %c0_13] : memref<1x32xf32, #tpu.memory_space<vmem>>, vector<1x32xf32>
      %14 = vector.broadcast %13 : vector<1x32xf32> to vector<8x32xf32>
      %15 = arith.addf %12, %14 : vector<8x32xf32>
      %16 = math.tanh %15 : vector<8x32xf32>
      %c0_14 = arith.constant 0 : index
      %c0_15 = arith.constant 0 : index
      %17 = vector.load %arg4[%c0_14, %c0_15] : memref<8x32xf32, #tpu.memory_space<vmem>>, vector<8x32xf32>
      tpu.vector_store %arg4[%c0_14, %c0_15], %16 {strides = array<i32>} : memref<8x32xf32, #tpu.memory_space<vmem>>, vector<8x32xf32>,
    } else {
    }
    return
  }
  func.func @transform_0(%arg0: i32) -> (i32, i32) {
    %c0_i32 = arith.constant 0 : i32
    %c0_i32_0 = arith.constant 0 : i32
    return %c0_i32, %arg0 : i32, i32
  }
  func.func @transform_1(%arg0: i32) -> (i32, i32) {
    %c0_i32 = arith.constant 0 : i32
    %c0_i32_0 = arith.constant 0 : i32
    return %arg0, %c0_i32 : i32, i32
  }
  func.func @transform_2(%arg0: i32) -> (i32, i32) {
    %c0_i32 = arith.constant 0 : i32
    %c0_i32_0 = arith.constant 0 : i32
    %c0_i32_1 = arith.constant 0 : i32
    return %c0_i32, %c0_i32_0 : i32, i32
  }
  func.func @transform_3(%arg0: i32) -> (i32, i32) {
    %c0_i32 = arith.constant 0 : i32
    %c0_i32_0 = arith.constant 0 : i32
    %c0_i32_1 = arith.constant 0 : i32
    return %c0_i32, %c0_i32_0 : i32, i32
  }
}

</mosaic_0001>

<llo_original>
// kernel: tpu_custom_call.1
$region0: #{tpu_custom_call.1}
  #allocation0 [shape = 'u32[]', space=smem, size = 0x4, offset = 0x4, fixed_abs, tag = 'smem constant byte address 0x4 - core index']
  #allocation1 [shape = 'u32[144,128]{1,0:T(1,128)}', space=vmem, size = 0x12000, scoped, tag = 'internal scratch']
  #allocation2 [shape = 'f32[8,32]{1,0:T(8,128)}', space=vmem, size = 0x1000, scoped, tag = 'scratch operand']
  %s0 = inlined_call_operand.hbm [shape: f32[8,32], index: 0, kind: input, shape index: {}]
  %s1 = inlined_call_operand.hbm [shape: f32[32,32], index: 1, kind: input, shape index: {}]
  %s2 = inlined_call_operand.vmem [shape: f32[1,32], index: 2, kind: input, shape index: {}]
  %s3 = inlined_call_operand.hbm [shape: f32[8,32], index: 3, kind: output, shape index: {}]
  %s4 = sld [smem:[#allocation0]]
  $region38: #{tpu_custom_call.1} parent=0
    _
  %s6 = ssub.s32 1, %s4
  %s7 = scalar_select 0, %s6, %s4
  $region1: #{tpu_custom_call.1} parent=0
    #allocation3 [shape = 'u8[4096]{0}', space=vmem, size = 0x1000, scoped, tag = 'input window, operand 0, single buffered']
    #allocation4 [shape = 's32[1]{0}', space=sflag, size = 0x4, scoped, tag = 'scoped memory for tpu_custom_call.1']
    #allocation5 [shape = 's32[1]{0}', space=sflag, size = 0x4, scoped, tag = 'scoped memory for tpu_custom_call.1']
    #allocation6 [shape = 'u8[16384]{0}', space=vmem, size = 0x4000, scoped, tag = 'input window, operand 1, single buffered']
    #allocation7 [shape = 's32[1]{0}', space=sflag, size = 0x4, scoped, tag = 'scoped memory for tpu_custom_call.1']
    #allocation8 [shape = 'u8[4096]{0}', space=vmem, size = 0x1000, scoped, tag = 'output window, operand 0, single buffered']
    %8 = vsyncpa [#allocation4], 0
    %9 = vsyncpa [#allocation7], 0
    %10 = vsyncpa [#allocation5], 0
    // Predicated region
    $region2: #{tpu_custom_call.1} parent=1 // pred_check
      _
    $region3: #{tpu_custom_call.1} parent=1 // pred_check_branch
      %12 = sbr.rel (0) target = $region5
    $region4: #{tpu_custom_call.1} parent=1 // pred_region
      %s14 = ssub.s32 128, 128
      %15 = vsyncadd [#allocation4], %s14
      %s17 = sshll.u32 [#allocation3], 4
      %s18 = int_to_ptr.vmem [resolvable:$true] %s17
      %20 = dma.hbm_to_vmem [thread:$0]  %s0, 128, %s18, [#allocation4]
    $region5: #{tpu_custom_call.1} parent=1 // pred_fallthru
      _
    // Predicated region
    $region6: #{tpu_custom_call.1} parent=1 // pred_check
      _
    $region7: #{tpu_custom_call.1} parent=1 // pred_check_branch
      %22 = sbr.rel (0) target = $region9
    $region8: #{tpu_custom_call.1} parent=1 // pred_region
      %s24 = ssub.s32 512, 512
      %25 = vsyncadd [#allocation7], %s24
      %s26 = sshll.u32 [#allocation6], 4
      %s27 = int_to_ptr.vmem [resolvable:$true] %s26
      %32 = dma.hbm_to_vmem [thread:$0]  %s1, 512, %s27, [#allocation7], 128, 128, 8
    $region9: #{tpu_custom_call.1} parent=1 // pred_fallthru
      _
    // Predicated region
    $region10: #{tpu_custom_call.1} parent=1 // pred_check
      _
    $region11: #{tpu_custom_call.1} parent=1 // pred_check_branch
      %34 = sbr.rel (0) target = $region13
    $region12: #{tpu_custom_call.1} parent=1 // pred_region
      _
    $region13: #{tpu_custom_call.1} parent=1 // pred_fallthru
      _
    // Predicated region
    $region14: #{tpu_custom_call.1} parent=1 // pred_check
      _
    $region15: #{tpu_custom_call.1} parent=1 // pred_check_branch
      %36 = sbr.rel (0) target = $region17
    $region16: #{tpu_custom_call.1} parent=1 // pred_region
      %37 = dma.done [#allocation4], 128
    $region17: #{tpu_custom_call.1} parent=1 // pred_fallthru
      _
    // Predicated region
    $region18: #{tpu_custom_call.1} parent=1 // pred_check
      _
    $region19: #{tpu_custom_call.1} parent=1 // pred_check_branch
      %39 = sbr.rel (0) target = $region21
    $region20: #{tpu_custom_call.1} parent=1 // pred_region
      %40 = dma.done [#allocation7], 512
    $region21: #{tpu_custom_call.1} parent=1 // pred_fallthru
      _
    %p41 = scmp.eq.s32.totalorder 0, 0
    // Predicated region
    $region22: #{tpu_custom_call.1} parent=1 // pred_check
      %p42 = pneg %p41
    $region23: #{tpu_custom_call.1} parent=1 // pred_check_branch
      %44 = sbr.rel (%p42) target = $region25
    $region24: #{tpu_custom_call.1} parent=1 // pred_region
      %vm45 = vcmask 261120
      %46 = vst.msk [vmem:[#allocation2] sm:$0xff] %vm45, 0.0
    $region25: #{tpu_custom_call.1} parent=1 // pred_fallthru
      _
    %v47 = vld [vmem:[#allocation2] sm:$0xff]
    %v48 = vld [vmem:[#allocation3] sm:$0xff]
    %v49 = vld [vmem:[#allocation6] sm:$0xff]
    %v50 = vld [vmem:[#allocation6 + $0x8] sm:$0xff]
    %v51 = vld [vmem:[#allocation6 + $0x10] sm:$0xff]
    %v52 = vld [vmem:[#allocation6 + $0x18] sm:$0xff]
    %vm53 = vcmask 261120
    %v55 = vsel %vm53, %v48, 0
    %57 = vmatprep.subr.mxu0 0.0
    %58 = vmatpush1.msra.mxu0 0.0
    %59 = vmatprep.subr.mxu0 0.0
    %60 = vmatpush1.msra.mxu0 0.0
    %61 = vmatprep.subr.mxu0 0.0
    %62 = vmatpush1.msra.mxu0 0.0
    %63 = vmatprep.subr.mxu0 0.0
    %64 = vmatpush1.msra.mxu0 0.0
    %65 = vmatprep.subr.mxu0 0.0
    %66 = vmatpush1.msra.mxu0 0.0
    %67 = vmatprep.subr.mxu0 0.0
    %68 = vmatpush1.msra.mxu0 0.0
    %69 = vmatprep.subr.mxu0 0.0
    %70 = vmatpush1.msra.mxu0 0.0
    %71 = vmatprep.subr.mxu0 0.0
    %72 = vmatpush1.msra.mxu0 0.0
    %73 = vmatprep.subr.mxu0 0.0
    %74 = vmatpush1.msra.mxu0 0.0
    %75 = vmatprep.subr.mxu0 0.0
    %76 = vmatpush1.msra.mxu0 0.0
    %77 = vmatprep.subr.mxu0 0.0
    %78 = vmatpush1.msra.mxu0 0.0
    %79 = vmatprep.subr.mxu0 0.0
    %80 = vmatpush1.msra.mxu0 0.0
    %81 = vmatprep.subr.mxu0 0.0
    %82 = vmatpush1.msra.mxu0 %v52
    %83 = vmatprep.subr.mxu0 0.0
    %84 = vmatpush1.msra.mxu0 %v51
    %85 = vmatprep.subr.mxu0 0.0
    %86 = vmatpush1.msra.mxu0 %v50
    %87 = vmatprep.subr.mxu0 0.0
    %88 = vmatpush1.msra.mxu0 %v49
    %89 = vmatprep.subr.mxu0 0.0
    %90 = vmatpush2.msra.mxu0 0.0
    %91 = vmatprep.subr.mxu0 0.0
    %92 = vmatpush2.msra.mxu0 0.0
    %93 = vmatprep.subr.mxu0 0.0
    %94 = vmatpush2.msra.mxu0 0.0
    %95 = vmatprep.subr.mxu0 0.0
    %96 = vmatpush2.msra.mxu0 0.0
    %97 = vmatprep.subr.mxu0 0.0
    %98 = vmatpush2.msra.mxu0 0.0
    %99 = vmatprep.subr.mxu0 0.0
    %100 = vmatpush2.msra.mxu0 0.0
    %101 = vmatprep.subr.mxu0 0.0
    %102 = vmatpush2.msra.mxu0 0.0
    %103 = vmatprep.subr.mxu0 0.0
    %104 = vmatpush2.msra.mxu0 0.0
    %105 = vmatprep.subr.mxu0 0.0
    %106 = vmatpush2.msra.mxu0 0.0
    %107 = vmatprep.subr.mxu0 0.0
    %108 = vmatpush2.msra.mxu0 0.0
    %109 = vmatprep.subr.mxu0 0.0
    %110 = vmatpush2.msra.mxu0 0.0
    %111 = vmatprep.subr.mxu0 0.0
    %112 = vmatpush2.msra.mxu0 0.0
    %113 = vmatprep.subr.mxu0 0.0
    %114 = vmatpush2.msra.mxu0 0.0
    %115 = vmatprep.subr.mxu0 0.0
    %116 = vmatpush2.msra.mxu0 0.0
    %117 = vmatprep.subr.mxu0 0.0
    %118 = vmatpush2.msra.mxu0 0.0
    %119 = vmatprep.subr.mxu0 0.0
    %120 = vmatpush2.msra.mxu0 0.0
    %121 = vmatprep.mubr.f32.mxu0 0.0
    %122 = vmatmul.mubr.f32.gmra.mxu0 %v55
    %v123 = vpop.f32.mrf.mxu0
    %v124 = vadd.f32 0.0, %v123
    %v125 = vpop.f32.mrf.mxu0
    %126 = vdwg.mxu0
    %v127 = vadd.f32 %v47, %v124
    %128 = vst.msk [vmem:[#allocation2] sm:$0xff] %vm53, %v127
    // Predicated region
    $region26: #{tpu_custom_call.1} parent=1 // pred_check
      %p129 = pneg %p41
    $region27: #{tpu_custom_call.1} parent=1 // pred_check_branch
      %131 = sbr.rel (%p129) target = $region29
    $region28: #{tpu_custom_call.1} parent=1 // pred_region
      %v132 = vld [vmem:[#allocation2] sm:$0xff]
      %v133 = vld [vmem:[%s2] sm:$0x1]
      %v135 = vlaneseq
      %v136 = vshrl.u32 %v135, 7
      %v137 = vsub.s32 0, %v136
      %v138 = vrot.slane %v133, %v137
      %v140 = vadd.f32 %v132, %v138
      %v141 = vtanh.pop %v140
      %142 = vst.msk [vmem:[#allocation8] sm:$0xff] %vm53, %v141
    $region29: #{tpu_custom_call.1} parent=1 // pred_fallthru
      _
    // Predicated region
    $region30: #{tpu_custom_call.1} parent=1 // pred_check
      _
    $region31: #{tpu_custom_call.1} parent=1 // pred_check_branch
      %144 = sbr.rel (0) target = $region33
    $region32: #{tpu_custom_call.1} parent=1 // pred_region
      %s146 = ssub.s32 128, 128
      %147 = vsyncadd [#allocation5], %s146
      %s149 = sshll.u32 [#allocation8], 4
      %s150 = int_to_ptr.vmem [resolvable:$true] %s149
      %152 = dma.vmem_to_hbm [thread:$0]  %s150, 128, %s3, [#allocation5]
    $region33: #{tpu_custom_call.1} parent=1 // pred_fallthru
      _
    // Predicated region
    $region34: #{tpu_custom_call.1} parent=1 // pred_check
      _
    $region35: #{tpu_custom_call.1} parent=1 // pred_check_branch
      %154 = sbr.rel (0) target = $region37
    $region36: #{tpu_custom_call.1} parent=1 // pred_region
      %155 = dma.done [#allocation5], 128
    $region37: #{tpu_custom_call.1} parent=1 // pred_fallthru
      _
    %156 = vsyncpa [#allocation4], 1
    %157 = vsyncpa [#allocation7], 1
    %158 = vsyncpa [#allocation5], 1

</llo_original>
